<compile_context>
chip_gen: v7x
topology: tpu7x:2x2x1
jax: 0.10.0
libtpu: 0.0.40
codegen_flags: <defaults>
</compile_context>

<pallas_src>
import jax
import jax.numpy as jnp
from jax.experimental import pallas as pl
from jax.experimental.pallas import tpu as pltpu

NEG_SLOPE = 0.2
NEG_INF = -1e30
LANE = 128
TM = 128                       # target-row tile (keeps the [H,TM,N] bf16 ealpha tile v7x-safe)
VMEM_LIMIT = 48 * 1024 * 1024  # below v7x physical 64 MiB, above v5e/v6e scoped defaults


def _round_up(v, m):
    return ((v + m - 1) // m) * m


def _const_spec(a):
    nd = a.ndim
    return pl.BlockSpec(a.shape, lambda i, _nd=nd: (0,) * _nd)


# ---------------------------------------------------------------------------
# Kernels
# ---------------------------------------------------------------------------
def proj_kernel(x_ref, w_ref, hw_ref):
    """Hoisted feature projection: bf16 x bf16 -> f32 accumulate -> bf16 lane-dense slab."""
    hw_ref[...] = jnp.dot(x_ref[...], w_ref[...],
                          preferred_element_type=jnp.float32).astype(jnp.bfloat16)


def conv1_attn_kernel(hw_t_ref, hw_all_ref, asrc_ref, ealpha_ref,
                      adst_bd_ref, b1_ref, out1_ref):
    """GAT layer 1 (heads concatenated) + bias + ELU for one tile of target rows.

    hw_t / hw_all are the precomputed bf16 projections; asrc is the precomputed [H, N]
    source coefficient; ealpha already carries the additive -1e30 non-edge mask, so no
    adjacency stream / per-head mask add is needed here.
    """
    n_head = adst_bd_ref.shape[1]
    hc = b1_ref.shape[1]                     # true (unpadded) H*C1
    c = hc // n_head
    tm = hw_t_ref.shape[0]

    hw_t = hw_t_ref[...]                     # bf16 [TM, HC_PAD]
    hw_all = hw_all_ref[...]                 # bf16 [N,  HC_PAD]
    a_src = asrc_ref[...]                    # f32  [H,  N]
    a_dst = jnp.dot(hw_t, adst_bd_ref[...],  # bf16 x bf16 -> f32  [TM, H]
                    preferred_element_type=jnp.float32)

    attn_rows = []
    for h in range(n_head):
        logits = a_dst[:, h:h + 1] + a_src[h:h + 1, :]                  # [TM, N]
        logits = logits + ealpha_ref[h].astype(jnp.float32)             # edge bias + mask
        logits = jnp.where(logits > 0, logits, NEG_SLOPE * logits)      # LeakyReLU(0.2)
        m = jnp.max(logits, axis=1, keepdims=True)
        e = jnp.exp(logits - m)                                         # masked -> 0
        attn = e * pl.reciprocal(jnp.sum(e, axis=1, keepdims=True), approx=True)
        attn_rows.append(attn.astype(jnp.bfloat16))

    # One lane-dense MXU pass for all heads; per-head results are the diagonal blocks.
    attn_stack = jnp.concatenate(attn_rows, axis=0)                     # bf16 [H*TM, N]
    agg = jnp.dot(attn_stack, hw_all, preferred_element_type=jnp.float32)

    out1 = jnp.concatenate(
        [agg[h * tm:(h + 1) * tm, h * c:(h + 1) * c] for h in range(n_head)],
        axis=1)                                                          # [TM, HC]
    out1 = out1 + b1_ref[...]
    out1 = jnp.where(out1 > 0, out1, jnp.exp(jnp.minimum(out1, 0.0)) - 1.0)  # ELU
    out1 = out1.astype(jnp.bfloat16)

    pad = out1_ref.shape[1] - hc
    if pad:
        out1 = jnp.concatenate([out1, jnp.zeros((tm, pad), jnp.bfloat16)], axis=1)
    out1_ref[...] = out1                                                 # lane-dense bf16 store


def conv2_attn_kernel(hw_t_ref, hw_all_ref, asrc_ref, adj_ref,
                      adst_bd_ref, b2_ref, out_ref):
    """GAT layer 2 (head mean) + bias + log_softmax for one tile of target rows."""
    n_head = adst_bd_ref.shape[1]
    c = b2_ref.shape[1]                      # C2
    tm = hw_t_ref.shape[0]

    hw_t = hw_t_ref[...]
    hw_all = hw_all_ref[...]
    a_src = asrc_ref[...]
    a_dst = jnp.dot(hw_t, adst_bd_ref[...], preferred_element_type=jnp.float32)

    # Additive mask built ONCE per tile from the int8 adjacency, reused by every head.
    mask_bias = jnp.where(adj_ref[...].astype(jnp.float32) > 0.0,
                          jnp.float32(0.0), jnp.float32(NEG_INF))        # [TM, N]

    attn_rows = []
    for h in range(n_head):
        logits = a_dst[:, h:h + 1] + a_src[h:h + 1, :]
        logits = jnp.where(logits > 0, logits, NEG_SLOPE * logits)       # LeakyReLU(0.2)
        logits = logits + mask_bias
        m = jnp.max(logits, axis=1, keepdims=True)
        e = jnp.exp(logits - m)
        attn = e * pl.reciprocal(jnp.sum(e, axis=1, keepdims=True), approx=True)
        attn_rows.append(attn.astype(jnp.bfloat16))

    attn_stack = jnp.concatenate(attn_rows, axis=0)                      # bf16 [H*TM, N]
    agg = jnp.dot(attn_stack, hw_all, preferred_element_type=jnp.float32)

    acc = agg[0:tm, 0:c]
    for h in range(1, n_head):
        acc = acc + agg[h * tm:(h + 1) * tm, h * c:(h + 1) * c]
    out2 = acc * (1.0 / n_head) + b2_ref[...]                            # head mean + bias

    # log_softmax over the feature dim.
    mx = jnp.max(out2, axis=1, keepdims=True)
    z = out2 - mx
    logp = z - jnp.log(jnp.sum(jnp.exp(z), axis=1, keepdims=True))

    pad = out_ref.shape[1] - 2 * c
    pieces = [out2, logp]
    if pad:
        pieces.append(jnp.zeros((tm, pad), jnp.float32))
    out_ref[...] = jnp.concatenate(pieces, axis=1)                       # single lane-dense store


# ---------------------------------------------------------------------------
# Parameters & wrapper
# ---------------------------------------------------------------------------
def init_params(key, nfeat, nhid, n_head):
    ks = jax.random.split(key, 8)
    g = lambda k, shape: jax.random.normal(k, shape, jnp.float32) * 0.1
    return dict(
        n_head=n_head, nhid=nhid,
        # conv1: GATConv(nfeat, nhid, heads=n_head, edge_dim=nhid, concat=True)
        w1=g(ks[0], (nfeat, n_head * nhid)),
        att1_src=g(ks[1], (n_head, nhid)),
        att1_dst=g(ks[2], (n_head, nhid)),
        att1_edge=g(ks[3], (n_head, nhid)),
        w1_edge=g(ks[4], (nhid, n_head * nhid)),
        b1=jnp.zeros((1, n_head * nhid), jnp.float32),
        # conv2: GATConv(nhid*n_head, nhid, heads=n_head, concat=False)
        w2=g(ks[5], (n_head * nhid, n_head * nhid)),
        att2_src=g(ks[6], (n_head, nhid)),
        att2_dst=g(ks[7], (n_head, nhid)),
        b2=jnp.zeros((1, nhid), jnp.float32),
    )


def _block_diag(att):
    """[H, C] per-head vectors -> [H*C, H] block-diagonal matrix (tiny, built once)."""
    n_head, c = att.shape
    bd = jnp.zeros((n_head * c, n_head), jnp.float32)
    for h in range(n_head):
        bd = bd.at[h * c:(h + 1) * c, h].set(att[h])
    return bd


def gat_encoder_forward(x, edge_index, edge_attr, params):
    N, F = x.shape
    H, C1 = params["n_head"], params["nhid"]
    C2 = params["nhid"]
    HC1, HC2 = H * C1, H * C2
    HC1_PAD = _round_up(HC1, LANE)
    HC2_PAD = _round_up(HC2, LANE)
    OUT_PAD = _round_up(2 * C2, LANE)

    # Pad the node dim up to a multiple of the row tile (never a whole-graph single tile).
    # Padded rows get a self-loop only; their outputs are dropped at the end.
    N_pad = _round_up(max(N, TM), TM)
    grid = (N_pad // TM,)
    cparams = pltpu.CompilerParams(
        dimension_semantics=("parallel",),
        vmem_limit_bytes=VMEM_LIMIT)

    src, dst = edge_index[0], edge_index[1]
    diag = jnp.arange(N_pad)

    # Dense adjacency (int8): adj[i, j] = 1 iff edge j -> i; + self-loops for every row.
    # TODO(synk): duplicate parallel edges collapse into one entry; PyG softmaxes each one.
    adj = jnp.zeros((N_pad, N_pad), jnp.int8).at[dst, src].set(1)
    adj = adj.at[diag, diag].set(1)

    # TODO(synk): lin_edge over the sparse edge list stays in JAX glue; the densified
    # [H, N, N] per-head edge bias dominates HBM traffic for large graphs and should
    # eventually be computed from the sparse edge list via scalar prefetch.
    we, ae = params["w1_edge"], params["att1_edge"]
    eh = (edge_attr @ we).reshape(-1, H, C1)                               # [E, H, C1]
    alpha_e = jnp.sum(eh * ae[None], axis=-1)                              # [E, H]
    deg = jnp.zeros((N,), jnp.float32).at[dst].add(1.0)
    loop_attr = jnp.zeros((N, edge_attr.shape[1]), jnp.float32).at[dst].add(edge_attr)
    loop_attr = loop_attr / jnp.maximum(deg, 1.0)[:, None]                 # fill_value='mean'
    loop_alpha = jnp.sum((loop_attr @ we).reshape(N, H, C1) * ae[None], axis=-1)  # [N, H]
    loop_alpha = jnp.zeros((N_pad, H), jnp.float32).at[jnp.arange(N)].set(loop_alpha)

    # Fold the -1e30 non-edge mask directly into the bf16 edge bias (conv1 needs no adjacency).
    mask_bias = jnp.where(adj > 0, 0.0, NEG_INF).astype(jnp.float32)       # [N_pad, N_pad]
    ealpha = jnp.zeros((H, N_pad, N_pad), jnp.float32)
    ealpha = ealpha.at[:, dst, src].set(alpha_e.T)
    ealpha = ealpha.at[:, diag, diag].set(loop_alpha.T)
    ealpha = (ealpha + mask_bias[None]).astype(jnp.bfloat16)               # bf16 HBM stream

    # Host-side weight prep (tiny, one-time). bf16 operands, zero padding is exact.
    x_pad = jnp.zeros((N_pad, F), jnp.bfloat16).at[:N].set(x.astype(jnp.bfloat16))
    w1_pad = jnp.zeros((F, HC1_PAD), jnp.bfloat16).at[:, :HC1].set(
        params["w1"].astype(jnp.bfloat16))
    w2_pad = jnp.zeros((HC1_PAD, HC2_PAD), jnp.bfloat16).at[:HC1, :HC2].set(
        params["w2"].astype(jnp.bfloat16))
    a1s_bd = _block_diag(params["att1_src"])                               # [HC1, H] f32
    a2s_bd = _block_diag(params["att2_src"])                               # [HC2, H] f32
    a1d_bd_pad = jnp.zeros((HC1_PAD, H), jnp.bfloat16).at[:HC1].set(
        _block_diag(params["att1_dst"]).astype(jnp.bfloat16))
    a2d_bd_pad = jnp.zeros((HC2_PAD, H), jnp.bfloat16).at[:HC2].set(
        _block_diag(params["att2_dst"]).astype(jnp.bfloat16))
    b1, b2 = params["b1"], params["b2"]

    def project(x_in, w_pad):
        n_pad, f_in = x_in.shape
        hc_pad = w_pad.shape[1]
        return pl.pallas_call(
            proj_kernel,
            out_shape=jax.ShapeDtypeStruct((n_pad, hc_pad), jnp.bfloat16),
            grid=grid,
            in_specs=[pl.BlockSpec((TM, f_in), lambda i: (i, 0)),
                      _const_spec(w_pad)],
            out_specs=pl.BlockSpec((TM, hc_pad), lambda i: (i, 0)),
            compiler_params=cparams,
        )(x_in, w_pad)

    # ---------------- layer 1: hoisted projection + per-tile attention ----------------
    hw1 = project(x_pad, w1_pad)                                # [N_pad, HC1_PAD] bf16
    # Hoisted per-head source coefficients, computed ONCE per layer (not per tile),
    # laid out [H, N] so the kernel needs no transpose.
    a_src1 = (hw1[:, :HC1].astype(jnp.float32) @ a1s_bd).T      # [H, N_pad] f32

    out1 = pl.pallas_call(
        conv1_attn_kernel,
        out_shape=jax.ShapeDtypeStruct((N_pad, HC1_PAD), jnp.bfloat16),
        grid=grid,
        in_specs=[
            pl.BlockSpec((TM, HC1_PAD), lambda i: (i, 0)),      # hw1, target rows
            pl.BlockSpec((N_pad, HC1_PAD), lambda i: (0, 0)),   # hw1, all source rows
            _const_spec(a_src1),                                # [H, N_pad] f32
            pl.BlockSpec((H, TM, N_pad), lambda i: (0, i, 0)),  # masked edge bias (bf16)
            _const_spec(a1d_bd_pad), _const_spec(b1),
        ],
        out_specs=pl.BlockSpec((TM, HC1_PAD), lambda i: (i, 0)),
        compiler_params=cparams,
    )(hw1, hw1, a_src1, ealpha, a1d_bd_pad, b1)

    # ---------------- layer 2 ----------------------------------------------------------
    hw2 = project(out1, w2_pad)                                 # [N_pad, HC2_PAD] bf16
    a_src2 = (hw2[:, :HC2].astype(jnp.float32) @ a2s_bd).T      # [H, N_pad] f32

    slab = pl.pallas_call(
        conv2_attn_kernel,
        out_shape=jax.ShapeDtypeStruct((N_pad, OUT_PAD), jnp.float32),
        grid=grid,
        in_specs=[
            pl.BlockSpec((TM, HC2_PAD), lambda i: (i, 0)),      # hw2, target rows
            pl.BlockSpec((N_pad, HC2_PAD), lambda i: (0, 0)),   # hw2, all source rows
            _const_spec(a_src2),
            pl.BlockSpec((TM, N_pad), lambda i: (i, 0)),        # int8 adjacency rows
            _const_spec(a2d_bd_pad), _const_spec(b2),
        ],
        out_specs=pl.BlockSpec((TM, OUT_PAD), lambda i: (i, 0)),
        compiler_params=cparams,
    )(hw2, hw2, a_src2, adj, a2d_bd_pad, b2)

    out = slab[:N, :C2]
    logp = slab[:N, C2:2 * C2]
    return out, logp


if __name__ == "__main__":
    key = jax.random.PRNGKey(0)
    N, NFEAT, NHID, NHEAD = 8, 16, 8, 4

    kx, ka, kp = jax.random.split(key, 3)
    x = jax.random.normal(kx, (N, NFEAT), jnp.float32)

    # deterministic edge list: ring + skip-2 ring (unique directed edges, no self-loops)
    src = jnp.concatenate([jnp.arange(N), jnp.arange(N)])
    dst = jnp.concatenate([(jnp.arange(N) + 1) % N, (jnp.arange(N) + 2) % N])
    edge_index = jnp.stack([src, dst]).astype(jnp.int32)                    # [2, 16]
    edge_attr = jax.random.normal(ka, (edge_index.shape[1], NHID), jnp.float32)

    params = init_params(kp, NFEAT, NHID, NHEAD)
    out, logp = gat_encoder_forward(x, edge_index, edge_attr, params)
    jax.block_until_ready((out, logp))
    assert out.shape == (N, NHID) and logp.shape == (N, NHID)
    assert bool(jnp.all(jnp.isfinite(out))) and bool(jnp.all(jnp.isfinite(logp)))
    print("KERNEL_OK")
</pallas_src>

<mosaic_0001>
module attributes {stable_mosaic.version = 11 : i64} {
  func.func @proj_kernel(%arg0: i32, %arg1: memref<128x16xbf16, #tpu.memory_space<vmem>>, %arg2: memref<16x128xbf16, #tpu.memory_space<vmem>>, %arg3: memref<128x128xbf16, #tpu.memory_space<vmem>>) attributes {dimension_semantics = [#tpu.dimension_semantics<parallel>], iteration_bounds = array<i64: 1>, scalar_prefetch = 0 : i64, scratch_operands = 0 : i64, tpu.core_type = #tpu.core_type<tc>, window_params = [{transform_indices = @transform_0, window_bounds = array<i64: 128, 16>}, {pipeline_mode = #tpu.pipeline_mode<synchronous>, transform_indices = @transform_1, window_bounds = array<i64: 16, 128>}, {transform_indices = @transform_2, window_bounds = array<i64: 128, 128>}]} {
    %c0 = arith.constant 0 : index
    %c0_0 = arith.constant 0 : index
    %0 = vector.load %arg1[%c0, %c0_0] : memref<128x16xbf16, #tpu.memory_space<vmem>>, vector<128x16xbf16>
    %c0_1 = arith.constant 0 : index
    %c0_2 = arith.constant 0 : index
    %1 = vector.load %arg2[%c0_1, %c0_2] : memref<16x128xbf16, #tpu.memory_space<vmem>>, vector<16x128xbf16>
    %cst = arith.constant dense<0.000000e+00> : vector<128x128xf32>
    %2 = tpu.matmul %0, %1, %cst {dimension_numbers = #tpu.dot_dimension_numbers<[1], [0], [0], [1], [0, 0, 1, 1], [], []>} : vector<128x16xbf16>, vector<16x128xbf16>, vector<128x128xf32> -> vector<128x128xf32>
    %3 = arith.truncf %2 : vector<128x128xf32> to vector<128x128xbf16>
    %c0_3 = arith.constant 0 : index
    %c0_4 = arith.constant 0 : index
    %4 = vector.load %arg3[%c0_3, %c0_4] : memref<128x128xbf16, #tpu.memory_space<vmem>>, vector<128x128xbf16>
    tpu.vector_store %arg3[%c0_3, %c0_4], %3 {strides = array<i32>} : memref<128x128xbf16, #tpu.memory_space<vmem>>, vector<128x128xbf16>,
    return
  }
  func.func @transform_0(%arg0: i32) -> (i32, i32) {
    %c0_i32 = arith.constant 0 : i32
    %c0_i32_0 = arith.constant 0 : i32
    return %arg0, %c0_i32 : i32, i32
  }
  func.func @transform_1(%arg0: i32) -> (i32, i32) {
    %c0_i32 = arith.constant 0 : i32
    %c0_i32_0 = arith.constant 0 : i32
    %c0_i32_1 = arith.constant 0 : i32
    return %c0_i32, %c0_i32_0 : i32, i32
  }
  func.func @transform_2(%arg0: i32) -> (i32, i32) {
    %c0_i32 = arith.constant 0 : i32
    %c0_i32_0 = arith.constant 0 : i32
    return %arg0, %c0_i32 : i32, i32
  }
}

</mosaic_0001>

<llo_original>
// kernel: tpu_custom_call.1
$region0: #{tpu_custom_call.1}
  #allocation0 [shape = 'u32[]', space=smem, size = 0x4, offset = 0x4, fixed_abs, tag = 'smem constant byte address 0x4 - core index']
  #allocation1 [shape = 'u32[144,128]{1,0:T(1,128)}', space=vmem, size = 0x12000, scoped, tag = 'internal scratch']
  %s0 = inlined_call_operand.vmem [shape: bf16[128,16], index: 0, kind: input, shape index: {}]
  %s1 = inlined_call_operand.vmem [shape: bf16[16,128], index: 1, kind: input, shape index: {}]
  %s2 = inlined_call_operand.hbm [shape: bf16[128,128], index: 2, kind: output, shape index: {}]
  %s3 = sld [smem:[#allocation0]]
  $region18: #{tpu_custom_call.1} parent=0
    _
  %s5 = ssub.s32 1, %s3
  %s6 = scalar_select 0, %s5, %s3
  $region1: #{tpu_custom_call.1} parent=0
    #allocation2 [shape = 'u8[32768]{0}', space=vmem, size = 0x8000, scoped, tag = 'output window, operand 0, single buffered']
    #allocation3 [shape = 's32[1]{0}', space=sflag, size = 0x4, scoped, tag = 'scoped memory for tpu_custom_call.1']
    %7 = vsyncpa [#allocation3], 0
    // Predicated region
    $region2: #{tpu_custom_call.1} parent=1 // pred_check
      _
    $region3: #{tpu_custom_call.1} parent=1 // pred_check_branch
      %9 = sbr.rel (0) target = $region5
    $region4: #{tpu_custom_call.1} parent=1 // pred_region
      _
    $region5: #{tpu_custom_call.1} parent=1 // pred_fallthru
      _
    // Predicated region
    $region6: #{tpu_custom_call.1} parent=1 // pred_check
      _
    $region7: #{tpu_custom_call.1} parent=1 // pred_check_branch
      %11 = sbr.rel (0) target = $region9
    $region8: #{tpu_custom_call.1} parent=1 // pred_region
      _
    $region9: #{tpu_custom_call.1} parent=1 // pred_fallthru
      _
    %v13 = vld [vmem:[%s0] sm:$0xf]
    %v14 = vld [vmem:[%s0 + $0x4] sm:$0xf]
    %v15 = vld [vmem:[%s0 + $0x8] sm:$0xf]
    %v16 = vld [vmem:[%s0 + $0xc] sm:$0xf]
    %v17 = vld [vmem:[%s0 + $0x10] sm:$0xf]
    %v18 = vld [vmem:[%s0 + $0x14] sm:$0xf]
    %v19 = vld [vmem:[%s0 + $0x18] sm:$0xf]
    %v20 = vld [vmem:[%s0 + $0x1c] sm:$0xf]
    %v21 = vld [vmem:[%s0 + $0x20] sm:$0xf]
    %v22 = vld [vmem:[%s0 + $0x24] sm:$0xf]
    %v23 = vld [vmem:[%s0 + $0x28] sm:$0xf]
    %v24 = vld [vmem:[%s0 + $0x2c] sm:$0xf]
    %v25 = vld [vmem:[%s0 + $0x30] sm:$0xf]
    %v26 = vld [vmem:[%s0 + $0x34] sm:$0xf]
    %v27 = vld [vmem:[%s0 + $0x38] sm:$0xf]
    %v28 = vld [vmem:[%s0 + $0x3c] sm:$0xf]
    %v29 = vld [vmem:[%s1] sm:$0xf]
    %v30 = vld [vmem:[%s1 + $0x4] sm:$0xf]
    %v47 = vunpack.c.l.b16 %v13
    %v48 = vunpack.c.l.b16 %v14
    %v49 = vunpack.c.l.b16 %v15
    %v50 = vunpack.c.l.b16 %v16
    %v51 = vunpack.c.l.b16 %v17
    %v52 = vunpack.c.l.b16 %v18
    %v53 = vunpack.c.l.b16 %v19
    %v54 = vunpack.c.l.b16 %v20
    %v55 = vunpack.c.l.b16 %v21
    %v56 = vunpack.c.l.b16 %v22
    %v57 = vunpack.c.l.b16 %v23
    %v58 = vunpack.c.l.b16 %v24
    %v59 = vunpack.c.l.b16 %v25
    %v60 = vunpack.c.l.b16 %v26
    %v61 = vunpack.c.l.b16 %v27
    %v62 = vunpack.c.l.b16 %v28
    %v63 = vpack.c.b16 %v48, %v47
    %v64 = vpack.c.b16 %v50, %v49
    %v65 = vpack.c.b16 %v52, %v51
    %v66 = vpack.c.b16 %v54, %v53
    %v67 = vpack.c.b16 %v56, %v55
    %v68 = vpack.c.b16 %v58, %v57
    %v69 = vpack.c.b16 %v60, %v59
    %v70 = vpack.c.b16 %v62, %v61
    %v73 = vunpack.c.l.b16 %v29
    %v74 = vunpack.c.l.b16 %v30
    %v75 = vpack.c.b16 %v74, %v73
    %vm77 = vcmask 130048
    %v79 = vsel %vm77, %v63, 0
    %v82 = vsel %vm77, %v64, 0
    %v85 = vsel %vm77, %v65, 0
    %v88 = vsel %vm77, %v66, 0
    %v91 = vsel %vm77, %v67, 0
    %v94 = vsel %vm77, %v68, 0
    %v97 = vsel %vm77, %v69, 0
    %v100 = vsel %vm77, %v70, 0
    %102 = vmatprep.subr.bf16.mxu0 0
    %103 = vmatpush1.bf16.msra.mxu0 %v75
    %104 = vmatprep.subr.bf16.mxu0 0
    %105 = vmatpush1.bf16.msra.mxu0 0
    %106 = vmatprep.subr.bf16.mxu0 0
    %107 = vmatpush1.bf16.msra.mxu0 0
    %108 = vmatprep.subr.bf16.mxu0 0
    %109 = vmatpush1.bf16.msra.mxu0 0
    %110 = vmatprep.subr.bf16.mxu0 0
    %111 = vmatpush1.bf16.msra.mxu0 0
    %112 = vmatprep.subr.bf16.mxu0 0
    %113 = vmatpush1.bf16.msra.mxu0 0
    %114 = vmatprep.subr.bf16.mxu0 0
    %115 = vmatpush1.bf16.msra.mxu0 0
    %116 = vmatprep.subr.bf16.mxu0 0
    %117 = vmatpush1.bf16.msra.mxu0 0
    %118 = vmatprep.subr.bf16.mxu0 0
    %119 = vmatpush1.bf16.msra.mxu0 0
    %120 = vmatprep.subr.bf16.mxu0 0
    %121 = vmatpush1.bf16.msra.mxu0 0
    %122 = vmatprep.subr.bf16.mxu0 0
    %123 = vmatpush1.bf16.msra.mxu0 0
    %124 = vmatprep.subr.bf16.mxu0 0
    %125 = vmatpush1.bf16.msra.mxu0 0
    %126 = vmatprep.subr.bf16.mxu0 0
    %127 = vmatpush1.bf16.msra.mxu0 0
    %128 = vmatprep.subr.bf16.mxu0 0
    %129 = vmatpush1.bf16.msra.mxu0 0
    %130 = vmatprep.subr.bf16.mxu0 0
    %131 = vmatpush1.bf16.msra.mxu0 0
    %132 = vmatprep.subr.bf16.mxu0 0
    %133 = vmatpush1.bf16.msra.mxu0 0
    %134 = vmatprep.mubr.bf16.mxu0 0
    %135 = vmatmul.mubr.bf16.gmra.mrb[0].mxu0 %v79
    %v136 = vpop.f32.mrb[0].mxu0
    %v137 = vadd.f32 0.0, %v136
    %v138 = vpop.f32.mrb[0].mxu0
    %v139 = vpop.f32.mrb[0].mxu0
    %v140 = vadd.f32 0.0, %v139
    %v141 = vpop.f32.mrb[0].mxu0
    %142 = vmatprep.mubr.bf16.mxu0 0
    %143 = vmatmul.mubr.bf16.gmra.mrb[0].mxu0 %v82
    %v144 = vpop.f32.mrb[0].mxu0
    %v145 = vadd.f32 0.0, %v144
    %v146 = vpop.f32.mrb[0].mxu0
    %v147 = vpop.f32.mrb[0].mxu0
    %v148 = vadd.f32 0.0, %v147
    %v149 = vpop.f32.mrb[0].mxu0
    %150 = vmatprep.mubr.bf16.mxu0 0
    %151 = vmatmul.mubr.bf16.gmra.mrb[0].mxu0 %v85
    %v152 = vpop.f32.mrb[0].mxu0
    %v153 = vadd.f32 0.0, %v152
    %v154 = vpop.f32.mrb[0].mxu0
    %v155 = vpop.f32.mrb[0].mxu0
    %v156 = vadd.f32 0.0, %v155
    %v157 = vpop.f32.mrb[0].mxu0
    %158 = vmatprep.mubr.bf16.mxu0 0
    %159 = vmatmul.mubr.bf16.gmra.mrb[0].mxu0 %v88
    %v160 = vpop.f32.mrb[0].mxu0
    %v161 = vadd.f32 0.0, %v160
    %v162 = vpop.f32.mrb[0].mxu0
    %v163 = vpop.f32.mrb[0].mxu0
    %v164 = vadd.f32 0.0, %v163
    %v165 = vpop.f32.mrb[0].mxu0
    %166 = vmatprep.mubr.bf16.mxu0 0
    %167 = vmatmul.mubr.bf16.gmra.mrb[0].mxu0 %v91
    %v168 = vpop.f32.mrb[0].mxu0
    %v169 = vadd.f32 0.0, %v168
    %v170 = vpop.f32.mrb[0].mxu0
    %v171 = vpop.f32.mrb[0].mxu0
    %v172 = vadd.f32 0.0, %v171
    %v173 = vpop.f32.mrb[0].mxu0
    %174 = vmatprep.mubr.bf16.mxu0 0
    %175 = vmatmul.mubr.bf16.gmra.mrb[0].mxu0 %v94
    %v176 = vpop.f32.mrb[0].mxu0
    %v177 = vadd.f32 0.0, %v176
    %v178 = vpop.f32.mrb[0].mxu0
    %v179 = vpop.f32.mrb[0].mxu0
    %v180 = vadd.f32 0.0, %v179
    %v181 = vpop.f32.mrb[0].mxu0
    %182 = vmatprep.mubr.bf16.mxu0 0
    %183 = vmatmul.mubr.bf16.gmra.mrb[0].mxu0 %v97
    %v184 = vpop.f32.mrb[0].mxu0
    %v185 = vadd.f32 0.0, %v184
    %v186 = vpop.f32.mrb[0].mxu0
    %v187 = vpop.f32.mrb[0].mxu0
    %v188 = vadd.f32 0.0, %v187
    %v189 = vpop.f32.mrb[0].mxu0
    %190 = vmatprep.mubr.bf16.mxu0 0
    %191 = vmatmul.mubr.bf16.gmra.mrb[0].mxu0 %v100
    %v192 = vpop.f32.mrb[0].mxu0
    %v193 = vadd.f32 0.0, %v192
    %v194 = vpop.f32.mrb[0].mxu0
    %v195 = vpop.f32.mrb[0].mxu0
    %v196 = vadd.f32 0.0, %v195
    %v197 = vpop.f32.mrb[0].mxu0
    %198 = vdwg.mxu0
    %v199 = vpack.c.bf16 %v140, %v137
    %v200 = vpack.c.bf16 %v148, %v145
    %v201 = vpack.c.bf16 %v156, %v153
    %v202 = vpack.c.bf16 %v164, %v161
    %v203 = vpack.c.bf16 %v172, %v169
    %v204 = vpack.c.bf16 %v180, %v177
    %v205 = vpack.c.bf16 %v188, %v185
    %v206 = vpack.c.bf16 %v196, %v193
    %v215 = vunpack.c.l.b16 %v199
    %v216 = vunpack.c.h.b16 %v199
    %v217 = vunpack.c.l.b16 %v200
    %v218 = vunpack.c.h.b16 %v200
    %v219 = vunpack.c.l.b16 %v201
    %v220 = vunpack.c.h.b16 %v201
    %v221 = vunpack.c.l.b16 %v202
    %v222 = vunpack.c.h.b16 %v202
    %v223 = vunpack.c.l.b16 %v203
    %v224 = vunpack.c.h.b16 %v203
    %v225 = vunpack.c.l.b16 %v204
    %v226 = vunpack.c.h.b16 %v204
    %v227 = vunpack.c.l.b16 %v205
    %v228 = vunpack.c.h.b16 %v205
    %v229 = vunpack.c.l.b16 %v206
    %v230 = vunpack.c.h.b16 %v206
    %v231 = vpack.c.b16 %v215, %v215
    %v232 = vpack.c.b16 %v216, %v216
    %v233 = vpack.c.b16 %v217, %v217
    %v234 = vpack.c.b16 %v218, %v218
    %v235 = vpack.c.b16 %v219, %v219
    %v236 = vpack.c.b16 %v220, %v220
    %v237 = vpack.c.b16 %v221, %v221
    %v238 = vpack.c.b16 %v222, %v222
    %v239 = vpack.c.b16 %v223, %v223
    %v240 = vpack.c.b16 %v224, %v224
    %v241 = vpack.c.b16 %v225, %v225
    %v242 = vpack.c.b16 %v226, %v226
    %v243 = vpack.c.b16 %v227, %v227
    %v244 = vpack.c.b16 %v228, %v228
    %v245 = vpack.c.b16 %v229, %v229
    %v246 = vpack.c.b16 %v230, %v230
    %263 = vst [vmem:[#allocation2] sm:$0xf] %v231
    %264 = vst [vmem:[#allocation2 + $0x4] sm:$0xf] %v232
    %265 = vst [vmem:[#allocation2 + $0x8] sm:$0xf] %v233
    %266 = vst [vmem:[#allocation2 + $0xc] sm:$0xf] %v234
    %267 = vst [vmem:[#allocation2 + $0x10] sm:$0xf] %v235
    %268 = vst [vmem:[#allocation2 + $0x14] sm:$0xf] %v236
    %269 = vst [vmem:[#allocation2 + $0x18] sm:$0xf] %v237
    %270 = vst [vmem:[#allocation2 + $0x1c] sm:$0xf] %v238
    %271 = vst [vmem:[#allocation2 + $0x20] sm:$0xf] %v239
    %272 = vst [vmem:[#allocation2 + $0x24] sm:$0xf] %v240
    %273 = vst [vmem:[#allocation2 + $0x28] sm:$0xf] %v241
    %274 = vst [vmem:[#allocation2 + $0x2c] sm:$0xf] %v242
    %275 = vst [vmem:[#allocation2 + $0x30] sm:$0xf] %v243
    %276 = vst [vmem:[#allocation2 + $0x34] sm:$0xf] %v244
    %277 = vst [vmem:[#allocation2 + $0x38] sm:$0xf] %v245
    %278 = vst [vmem:[#allocation2 + $0x3c] sm:$0xf] %v246
    // Predicated region
    $region10: #{tpu_custom_call.1} parent=1 // pred_check
      _
    $region11: #{tpu_custom_call.1} parent=1 // pred_check_branch
      %280 = sbr.rel (0) target = $region13
    $region12: #{tpu_custom_call.1} parent=1 // pred_region
      %s282 = ssub.s32 1024, 1024
      %283 = vsyncadd [#allocation3], %s282
      %s284 = sshll.u32 [#allocation2], 4
      %s285 = int_to_ptr.vmem [resolvable:$true] %s284
      %290 = dma.vmem_to_hbm [thread:$0]  %s285, 1024, %s2, [#allocation3], 64, 64, 4
    $region13: #{tpu_custom_call.1} parent=1 // pred_fallthru
      _
    // Predicated region
    $region14: #{tpu_custom_call.1} parent=1 // pred_check
      _
    $region15: #{tpu_custom_call.1} parent=1 // pred_check_branch
      %292 = sbr.rel (0) target = $region17
    $region16: #{tpu_custom_call.1} parent=1 // pred_region
      %293 = dma.done [#allocation3], 1024
    $region17: #{tpu_custom_call.1} parent=1 // pred_fallthru
      _
    %294 = vsyncpa [#allocation3], 1

</llo_original>
